<compile_context>
chip_gen: v6e
topology: v6e:2x2x1
jax: 0.10.0
libtpu: 0.0.40
codegen_flags: <defaults>
</compile_context>

<pallas_src>
import functools
import math

import jax
import jax.numpy as jnp
from jax.experimental import pallas as pl
from jax.experimental.pallas import tpu as pltpu

_VMEM_LIMIT_BYTES = 32 * 1024 * 1024     # explicit scoped-VMEM limit, < v7x 64 MiB physical
_BLOCK_BUDGET_BYTES = 20 * 1024 * 1024   # double-buffered block working-set target
_MAX_BLOCK_ROWS = 4096


# --------------------------------------------------------------------------- #
# Kernels
# --------------------------------------------------------------------------- #
def pos_enc_kernel(scale_ref, x_ref, pos_ref, div_ref, phase_ref, o_ref, *, groups):
    # scale_ref: SMEM (1,)        f32
    # x_ref:     VMEM (TR, Dp)    native dtype   (Dp = groups * D, lane-dense)
    # pos_ref:   VMEM (TR, G)     f32            (G positions folded per packed row)
    # div_ref:   VMEM (G, Dp)     f32  row g = div_term on lane block g, 0 elsewhere
    # phase_ref: VMEM (1, Dp)     f32  (0 on sin half, pi/2 on cos half, tiled G times)
    # o_ref:     VMEM (TR, Dp)    native dtype
    #
    # angle[r, g*D + d] = pos[r, g] * div_term[d] + phase[d]
    # Built with G broadcast multiply-adds (VPU); div rows are zero outside
    # their lane block so off-group contributions vanish exactly.
    angle = pos_ref[:, 0:1] * div_ref[0:1, :]
    for g in range(1, groups):
        angle = angle + pos_ref[:, g:g + 1] * div_ref[g:g + 1, :]
    angle = angle + phase_ref[...]
    pe = jnp.sin(angle)                       # one EUP transcendental per element
    o_ref[...] = x_ref[...] + (scale_ref[0] * pe).astype(o_ref.dtype)


def add_pe_kernel(scale_ref, x_ref, pe_ref, o_ref):
    # time_aware=False fast path: pe precomputed in the wrapper, zero
    # transcendentals in the kernel, pe tile reused across the batch axis.
    o_ref[...] = x_ref[...] + (scale_ref[0] * pe_ref[...]).astype(o_ref.dtype)


# --------------------------------------------------------------------------- #
# Helpers
# --------------------------------------------------------------------------- #
def _choose_block_rows(total_rows, per_row_bytes, cap=_MAX_BLOCK_ROWS):
    """Rows per tile: large enough to amortize the ~0.35 us/step grid overhead,
    small enough that the double-buffered (x in + out + pos) working set stays
    under ~20 MiB on every TPU generation."""
    tr = _BLOCK_BUDGET_BYTES // (2 * max(1, per_row_bytes))   # x2: double buffering
    tr = min(tr, cap)
    tr = max(8, (tr // 8) * 8)                                # sublane multiple
    if total_rows <= tr:
        return total_rows                                     # full-extent block is legal
    return tr


def _call_pallas(build, n_grid_axes, args):
    """Invoke `build(dimension_semantics)(*args)`, preferring CORE_PARALLEL on
    the leading grid axis (true 2-TensorCore sharding on v7x; harmless no-op on
    single-TC v5e/v6e).  Falls back to plain "parallel" if this Pallas/Mosaic
    build rejects it."""
    cp = getattr(pltpu, "CORE_PARALLEL", None)
    par = getattr(pltpu, "PARALLEL", None)
    if cp is not None and par is not None:
        try:
            out = build((cp,) + (par,) * (n_grid_axes - 1))(*args)
            jax.block_until_ready(out)      # surface runtime errors inside the try
            return out
        except Exception:
            pass
    return build(("parallel",) * n_grid_axes)(*args)


def _lane_pack_groups(width, rows):
    """G = 128 // width rows folded per lane-dense packed row, when legal."""
    if width < 128 and 128 % width == 0:
        g = 128 // width
        if g <= 16 and rows % g == 0:       # G > 16 (width < 8) is degenerate
            return g
    return 1


# --------------------------------------------------------------------------- #
# Wrapper
# --------------------------------------------------------------------------- #
def positional_encoding(x, time_intervals, scale, time_aware=True):
    """Pallas equivalent of PositionalEncoding.forward."""
    B, S, D = x.shape
    assert D % 2 == 0, "d_model assumed even (cat of sin/cos halves)"
    Dh = D // 2
    R = B * S

    scale_arr = jnp.asarray(scale, jnp.float32).reshape((1,))
    itemsize = jnp.dtype(x.dtype).itemsize

    # Hoisted constants (computed once in the wrapper).
    half = jnp.arange(Dh, dtype=jnp.float32)
    div_half = jnp.exp(half * (2.0 * (-math.log(10000.0) / D)))             # (Dh,)
    div_full = jnp.concatenate([div_half, div_half])                        # (D,)
    phase = jnp.concatenate(
        [jnp.zeros((Dh,), jnp.float32),
         jnp.full((Dh,), jnp.float32(math.pi / 2.0))])                      # (D,)

    if not time_aware:
        # NOTE: the original torch non-time-aware branch is shape-inconsistent;
        # we implement the intended semantics (sequence index as position).
        # pe depends only on the sequence index -> compute (S, D) once here and
        # stream a transcendental-free add kernel (pe tile reused across batch).
        a = jnp.arange(S, dtype=jnp.float32)[:, None] * div_half[None, :]   # (S, Dh)
        pe_seq = jnp.concatenate([jnp.sin(a), jnp.cos(a)], axis=-1)         # (S, D) f32

        G = _lane_pack_groups(D, S)
        Sp, Dp = S // G, G * D
        x_in = x.reshape(B, Sp, Dp)
        pe_in = pe_seq.reshape(1, Sp, Dp)

        per_row = Dp * 2 * itemsize + Dp * 4                # x + out + pe (f32)
        TS = _choose_block_rows(Sp, per_row)
        ns = pl.cdiv(Sp, TS)

        def build(sem):
            return pl.pallas_call(
                add_pe_kernel,
                out_shape=jax.ShapeDtypeStruct((B, Sp, Dp), x.dtype),
                grid=(ns, B),                                # batch innermost: pe tile resident
                in_specs=[
                    pl.BlockSpec(memory_space=pltpu.SMEM),                   # scale
                    pl.BlockSpec((1, TS, Dp), lambda i, b: (b, i, 0)),       # x
                    pl.BlockSpec((1, TS, Dp), lambda i, b: (0, i, 0)),       # pe (reused over b)
                ],
                out_specs=pl.BlockSpec((1, TS, Dp), lambda i, b: (b, i, 0)),
                compiler_params=pltpu.CompilerParams(
                    dimension_semantics=sem,
                    vmem_limit_bytes=_VMEM_LIMIT_BYTES),
            )

        out = _call_pallas(build, 2, (scale_arr, x_in, pe_in))
        return out.reshape(B, S, D)

    # ---- time-aware path --------------------------------------------------
    pos_rows = time_intervals[:, :, 1].astype(jnp.float32).reshape(R)       # (R,)

    # Lane-dense packing for narrow models (e.g. D=32): fold G = 128 // D rows
    # into one 128-lane packed row so every store is a full-width vst.
    G = _lane_pack_groups(D, R)
    Rp, Dp = R // G, G * D

    if G == 1:
        div_rows = div_full[None, :]                                        # (1, D)
        phase_row = phase[None, :]                                          # (1, D)
    else:
        eye = jnp.eye(G, dtype=jnp.float32)                                 # (G, G)
        div_rows = (eye[:, :, None] * div_full[None, None, :]).reshape(G, Dp)
        phase_row = jnp.tile(phase, G)[None, :]                             # (1, Dp)

    x2 = x.reshape(Rp, Dp)
    pos2 = pos_rows.reshape(Rp, G)

    # Honest per-row, per-buffer bytes: x tile + out tile + pos tile, with the
    # pos block counted at its lane-padded (TR, 128) f32 VMEM size.
    per_row = Dp * 2 * itemsize + 128 * 4
    TRp = _choose_block_rows(Rp, per_row)
    grid_n = pl.cdiv(Rp, TRp)

    kern = functools.partial(pos_enc_kernel, groups=G)

    def build(sem):
        # Resident (G, Dp)/(1, Dp) constants: constant index_map, tiny footprint.
        # TODO(synk): if a profile shows exposed DMA on the x stream (most
        # likely v5e), sweep pipeline_mode=pl.Buffered(3) on the x/out specs.
        return pl.pallas_call(
            kern,
            out_shape=jax.ShapeDtypeStruct((Rp, Dp), x.dtype),
            grid=(grid_n,),
            in_specs=[
                pl.BlockSpec(memory_space=pltpu.SMEM),          # scale
                pl.BlockSpec((TRp, Dp), lambda i: (i, 0)),      # x row tile
                pl.BlockSpec((TRp, G), lambda i: (i, 0)),       # pos row tile
                pl.BlockSpec((G, Dp), lambda i: (0, 0)),        # div rows (resident)
                pl.BlockSpec((1, Dp), lambda i: (0, 0)),        # phase    (resident)
            ],
            out_specs=pl.BlockSpec((TRp, Dp), lambda i: (i, 0)),
            compiler_params=pltpu.CompilerParams(
                dimension_semantics=sem,
                vmem_limit_bytes=_VMEM_LIMIT_BYTES),
        )

    out = _call_pallas(build, 1, (scale_arr, x2, pos2, div_rows, phase_row))
    return out.reshape(B, S, D)


# --------------------------------------------------------------------------- #
# Pure-JAX reference mirroring the PyTorch forward
# --------------------------------------------------------------------------- #
def reference(x, time_intervals, scale, time_aware=True):
    B, S, D = x.shape
    if time_aware:
        pos = time_intervals[:, :, 1][..., None].astype(jnp.float32)        # (B,S,1)
    else:
        pos = jnp.arange(S, dtype=jnp.float32)[None, :, None]               # (1,S,1)
    div_term = jnp.exp(
        jnp.arange(0, D, 2, dtype=jnp.float32) * (-math.log(10000.0) / D))
    pe = pos * div_term
    pe = jnp.concatenate([jnp.sin(pe), jnp.cos(pe)], axis=-1)
    return x + scale * pe[..., :D]


if __name__ == "__main__":
    scale = jnp.float32(1.0)   # nn.Parameter(torch.ones(1)) -> 1.0

    # ---- case 1: module-demo shapes (d_model=32) -> packed lane-dense path --
    B, S, D, K = 2, 8, 32, 2
    key = jax.random.PRNGKey(0)
    kx, kt = jax.random.split(key)
    x = jax.random.normal(kx, (B, S, D), dtype=jnp.float32)
    time_intervals = jax.random.uniform(kt, (B, S, K), dtype=jnp.float32) * 10.0

    out = jax.block_until_ready(
        positional_encoding(x, time_intervals, scale, time_aware=True))
    ref = reference(x, time_intervals, scale, time_aware=True)
    assert out.shape == (B, S, D)
    assert jnp.allclose(out, ref, atol=1e-5, rtol=1e-5), "mismatch (time_aware=True)"

    out_na = jax.block_until_ready(
        positional_encoding(x, time_intervals, scale, time_aware=False))
    ref_na = reference(x, time_intervals, scale, time_aware=False)
    assert jnp.allclose(out_na, ref_na, atol=1e-5, rtol=1e-5), "mismatch (time_aware=False)"

    # ---- case 2: D>=128 unpacked path, multi-step grid + partial last block --
    B2, S2, D2, K2 = 4, 1100, 256, 2
    k2x, k2t = jax.random.split(jax.random.PRNGKey(1))
    x2 = jax.random.normal(k2x, (B2, S2, D2), dtype=jnp.float32)
    ti2 = jax.random.uniform(k2t, (B2, S2, K2), dtype=jnp.float32) * 10.0
    out2 = jax.block_until_ready(
        positional_encoding(x2, ti2, scale, time_aware=True))
    ref2 = reference(x2, ti2, scale, time_aware=True)
    assert jnp.allclose(out2, ref2, atol=1e-5, rtol=1e-5), "mismatch (tiled case)"

    print("KERNEL_OK")
</pallas_src>

<mosaic_0001>
module attributes {stable_mosaic.version = 11 : i64} {
  func.func @pos_enc_kernel(%arg0: i32, %arg1: memref<1xf32, #tpu.memory_space<smem>>, %arg2: memref<4x128xf32, #tpu.memory_space<vmem>>, %arg3: memref<4x4xf32, #tpu.memory_space<vmem>>, %arg4: memref<4x128xf32, #tpu.memory_space<vmem>>, %arg5: memref<1x128xf32, #tpu.memory_space<vmem>>, %arg6: memref<4x128xf32, #tpu.memory_space<vmem>>) attributes {dimension_semantics = [#tpu.dimension_semantics<core_parallel>], iteration_bounds = array<i64: 1>, scalar_prefetch = 0 : i64, scratch_operands = 0 : i64, tpu.core_type = #tpu.core_type<tc>, window_params = [{transform_indices = @transform_0, window_bounds = array<i64: 1>}, {transform_indices = @transform_1, window_bounds = array<i64: 4, 128>}, {transform_indices = @transform_2, window_bounds = array<i64: 4, 4>}, {pipeline_mode = #tpu.pipeline_mode<synchronous>, transform_indices = @transform_3, window_bounds = array<i64: 4, 128>}, {pipeline_mode = #tpu.pipeline_mode<synchronous>, transform_indices = @transform_4, window_bounds = array<i64: 1, 128>}, {transform_indices = @transform_5, window_bounds = array<i64: 4, 128>}]} {
    %c0 = arith.constant 0 : index
    %c0_0 = arith.constant 0 : index
    %0 = vector.load %arg3[%c0, %c0_0] : memref<4x4xf32, #tpu.memory_space<vmem>>, vector<4x1xf32>
    %c0_1 = arith.constant 0 : index
    %c0_2 = arith.constant 0 : index
    %1 = vector.load %arg4[%c0_1, %c0_2] : memref<4x128xf32, #tpu.memory_space<vmem>>, vector<1x128xf32>
    %2 = vector.broadcast %0 : vector<4x1xf32> to vector<4x128xf32>
    %3 = vector.broadcast %1 : vector<1x128xf32> to vector<4x128xf32>
    %4 = arith.mulf %2, %3 : vector<4x128xf32>
    %c0_3 = arith.constant 0 : index
    %c1 = arith.constant 1 : index
    %5 = vector.load %arg3[%c0_3, %c1] : memref<4x4xf32, #tpu.memory_space<vmem>>, vector<4x1xf32>
    %c1_4 = arith.constant 1 : index
    %c0_5 = arith.constant 0 : index
    %6 = vector.load %arg4[%c1_4, %c0_5] : memref<4x128xf32, #tpu.memory_space<vmem>>, vector<1x128xf32>
    %7 = vector.broadcast %5 : vector<4x1xf32> to vector<4x128xf32>
    %8 = vector.broadcast %6 : vector<1x128xf32> to vector<4x128xf32>
    %9 = arith.mulf %7, %8 : vector<4x128xf32>
    %10 = arith.addf %4, %9 : vector<4x128xf32>
    %c0_6 = arith.constant 0 : index
    %c2 = arith.constant 2 : index
    %11 = vector.load %arg3[%c0_6, %c2] : memref<4x4xf32, #tpu.memory_space<vmem>>, vector<4x1xf32>
    %c2_7 = arith.constant 2 : index
    %c0_8 = arith.constant 0 : index
    %12 = vector.load %arg4[%c2_7, %c0_8] : memref<4x128xf32, #tpu.memory_space<vmem>>, vector<1x128xf32>
    %13 = vector.broadcast %11 : vector<4x1xf32> to vector<4x128xf32>
    %14 = vector.broadcast %12 : vector<1x128xf32> to vector<4x128xf32>
    %15 = arith.mulf %13, %14 : vector<4x128xf32>
    %16 = arith.addf %10, %15 : vector<4x128xf32>
    %c0_9 = arith.constant 0 : index
    %c3 = arith.constant 3 : index
    %17 = vector.load %arg3[%c0_9, %c3] : memref<4x4xf32, #tpu.memory_space<vmem>>, vector<4x1xf32>
    %c3_10 = arith.constant 3 : index
    %c0_11 = arith.constant 0 : index
    %18 = vector.load %arg4[%c3_10, %c0_11] : memref<4x128xf32, #tpu.memory_space<vmem>>, vector<1x128xf32>
    %19 = vector.broadcast %17 : vector<4x1xf32> to vector<4x128xf32>
    %20 = vector.broadcast %18 : vector<1x128xf32> to vector<4x128xf32>
    %21 = arith.mulf %19, %20 : vector<4x128xf32>
    %22 = arith.addf %16, %21 : vector<4x128xf32>
    %c0_12 = arith.constant 0 : index
    %c0_13 = arith.constant 0 : index
    %23 = vector.load %arg5[%c0_12, %c0_13] : memref<1x128xf32, #tpu.memory_space<vmem>>, vector<1x128xf32>
    %24 = vector.broadcast %23 : vector<1x128xf32> to vector<4x128xf32>
    %25 = arith.addf %22, %24 : vector<4x128xf32>
    %26 = math.sin %25 : vector<4x128xf32>
    %c0_14 = arith.constant 0 : index
    %c0_15 = arith.constant 0 : index
    %27 = vector.load %arg2[%c0_14, %c0_15] : memref<4x128xf32, #tpu.memory_space<vmem>>, vector<4x128xf32>
    %c0_16 = arith.constant 0 : index
    %28 = memref.load %arg1[%c0_16] : memref<1xf32, #tpu.memory_space<smem>>
    %29 = vector.broadcast %28 : f32 to vector<4x128xf32>
    %30 = arith.mulf %29, %26 : vector<4x128xf32>
    %31 = arith.addf %27, %30 : vector<4x128xf32>
    %c0_17 = arith.constant 0 : index
    %c0_18 = arith.constant 0 : index
    %32 = vector.load %arg6[%c0_17, %c0_18] : memref<4x128xf32, #tpu.memory_space<vmem>>, vector<4x128xf32>
    tpu.vector_store %arg6[%c0_17, %c0_18], %31 {strides = array<i32>} : memref<4x128xf32, #tpu.memory_space<vmem>>, vector<4x128xf32>,
    return
  }
  func.func @transform_0(%arg0: i32) -> i32 {
    %c0_i32 = arith.constant 0 : i32
    %c0_i32_0 = arith.constant 0 : i32
    return %c0_i32 : i32
  }
  func.func @transform_1(%arg0: i32) -> (i32, i32) {
    %c0_i32 = arith.constant 0 : i32
    %c0_i32_0 = arith.constant 0 : i32
    return %arg0, %c0_i32 : i32, i32
  }
  func.func @transform_2(%arg0: i32) -> (i32, i32) {
    %c0_i32 = arith.constant 0 : i32
    %c0_i32_0 = arith.constant 0 : i32
    return %arg0, %c0_i32 : i32, i32
  }
  func.func @transform_3(%arg0: i32) -> (i32, i32) {
    %c0_i32 = arith.constant 0 : i32
    %c0_i32_0 = arith.constant 0 : i32
    %c0_i32_1 = arith.constant 0 : i32
    return %c0_i32, %c0_i32_0 : i32, i32
  }
  func.func @transform_4(%arg0: i32) -> (i32, i32) {
    %c0_i32 = arith.constant 0 : i32
    %c0_i32_0 = arith.constant 0 : i32
    %c0_i32_1 = arith.constant 0 : i32
    return %c0_i32, %c0_i32_0 : i32, i32
  }
  func.func @transform_5(%arg0: i32) -> (i32, i32) {
    %c0_i32 = arith.constant 0 : i32
    %c0_i32_0 = arith.constant 0 : i32
    return %arg0, %c0_i32 : i32, i32
  }
}

module attributes {stable_mosaic.version = 11 : i64} {
  func.func @pos_enc_kernel(%arg0: i32, %arg1: memref<1xf32, #tpu.memory_space<smem>>, %arg2: memref<4x128xf32, #tpu.memory_space<vmem>>, %arg3: memref<4x4xf32, #tpu.memory_space<vmem>>, %arg4: memref<4x128xf32, #tpu.memory_space<vmem>>, %arg5: memref<1x128xf32, #tpu.memory_space<vmem>>, %arg6: memref<4x128xf32, #tpu.memory_space<vmem>>) attributes {dimension_semantics = [#tpu.dimension_semantics<parallel>], iteration_bounds = array<i64: 1>, scalar_prefetch = 0 : i64, scratch_operands = 0 : i64, tpu.core_type = #tpu.core_type<tc>, window_params = [{transform_indices = @transform_0, window_bounds = array<i64: 1>}, {transform_indices = @transform_1, window_bounds = array<i64: 4, 128>}, {transform_indices = @transform_2, window_bounds = array<i64: 4, 4>}, {pipeline_mode = #tpu.pipeline_mode<synchronous>, transform_indices = @transform_3, window_bounds = array<i64: 4, 128>}, {pipeline_mode = #tpu.pipeline_mode<synchronous>, transform_indices = @transform_4, window_bounds = array<i64: 1, 128>}, {transform_indices = @transform_5, window_bounds = array<i64: 4, 128>}]} {
    %c0 = arith.constant 0 : index
    %c0_0 = arith.constant 0 : index
    %0 = vector.load %arg3[%c0, %c0_0] : memref<4x4xf32, #tpu.memory_space<vmem>>, vector<4x1xf32>
    %c0_1 = arith.constant 0 : index
    %c0_2 = arith.constant 0 : index
    %1 = vector.load %arg4[%c0_1, %c0_2] : memref<4x128xf32, #tpu.memory_space<vmem>>, vector<1x128xf32>
    %2 = vector.broadcast %0 : vector<4x1xf32> to vector<4x128xf32>
    %3 = vector.broadcast %1 : vector<1x128xf32> to vector<4x128xf32>
    %4 = arith.mulf %2, %3 : vector<4x128xf32>
    %c0_3 = arith.constant 0 : index
    %c1 = arith.constant 1 : index
    %5 = vector.load %arg3[%c0_3, %c1] : memref<4x4xf32, #tpu.memory_space<vmem>>, vector<4x1xf32>
    %c1_4 = arith.constant 1 : index
    %c0_5 = arith.constant 0 : index
    %6 = vector.load %arg4[%c1_4, %c0_5] : memref<4x128xf32, #tpu.memory_space<vmem>>, vector<1x128xf32>
    %7 = vector.broadcast %5 : vector<4x1xf32> to vector<4x128xf32>
    %8 = vector.broadcast %6 : vector<1x128xf32> to vector<4x128xf32>
    %9 = arith.mulf %7, %8 : vector<4x128xf32>
    %10 = arith.addf %4, %9 : vector<4x128xf32>
    %c0_6 = arith.constant 0 : index
    %c2 = arith.constant 2 : index
    %11 = vector.load %arg3[%c0_6, %c2] : memref<4x4xf32, #tpu.memory_space<vmem>>, vector<4x1xf32>
    %c2_7 = arith.constant 2 : index
    %c0_8 = arith.constant 0 : index
    %12 = vector.load %arg4[%c2_7, %c0_8] : memref<4x128xf32, #tpu.memory_space<vmem>>, vector<1x128xf32>
    %13 = vector.broadcast %11 : vector<4x1xf32> to vector<4x128xf32>
    %14 = vector.broadcast %12 : vector<1x128xf32> to vector<4x128xf32>
    %15 = arith.mulf %13, %14 : vector<4x128xf32>
    %16 = arith.addf %10, %15 : vector<4x128xf32>
    %c0_9 = arith.constant 0 : index
    %c3 = arith.constant 3 : index
    %17 = vector.load %arg3[%c0_9, %c3] : memref<4x4xf32, #tpu.memory_space<vmem>>, vector<4x1xf32>
    %c3_10 = arith.constant 3 : index
    %c0_11 = arith.constant 0 : index
    %18 = vector.load %arg4[%c3_10, %c0_11] : memref<4x128xf32, #tpu.memory_space<vmem>>, vector<1x128xf32>
    %19 = vector.broadcast %17 : vector<4x1xf32> to vector<4x128xf32>
    %20 = vector.broadcast %18 : vector<1x128xf32> to vector<4x128xf32>
    %21 = arith.mulf %19, %20 : vector<4x128xf32>
    %22 = arith.addf %16, %21 : vector<4x128xf32>
    %c0_12 = arith.constant 0 : index
    %c0_13 = arith.constant 0 : index
    %23 = vector.load %arg5[%c0_12, %c0_13] : memref<1x128xf32, #tpu.memory_space<vmem>>, vector<1x128xf32>
    %24 = vector.broadcast %23 : vector<1x128xf32> to vector<4x128xf32>
    %25 = arith.addf %22, %24 : vector<4x128xf32>
    %26 = math.sin %25 : vector<4x128xf32>
    %c0_14 = arith.constant 0 : index
    %c0_15 = arith.constant 0 : index
    %27 = vector.load %arg2[%c0_14, %c0_15] : memref<4x128xf32, #tpu.memory_space<vmem>>, vector<4x128xf32>
    %c0_16 = arith.constant 0 : index
    %28 = memref.load %arg1[%c0_16] : memref<1xf32, #tpu.memory_space<smem>>
    %29 = vector.broadcast %28 : f32 to vector<4x128xf32>
    %30 = arith.mulf %29, %26 : vector<4x128xf32>
    %31 = arith.addf %27, %30 : vector<4x128xf32>
    %c0_17 = arith.constant 0 : index
    %c0_18 = arith.constant 0 : index
    %32 = vector.load %arg6[%c0_17, %c0_18] : memref<4x128xf32, #tpu.memory_space<vmem>>, vector<4x128xf32>
    tpu.vector_store %arg6[%c0_17, %c0_18], %31 {strides = array<i32>} : memref<4x128xf32, #tpu.memory_space<vmem>>, vector<4x128xf32>,
    return
  }
  func.func @transform_0(%arg0: i32) -> i32 {
    %c0_i32 = arith.constant 0 : i32
    %c0_i32_0 = arith.constant 0 : i32
    return %c0_i32 : i32
  }
  func.func @transform_1(%arg0: i32) -> (i32, i32) {
    %c0_i32 = arith.constant 0 : i32
    %c0_i32_0 = arith.constant 0 : i32
    return %arg0, %c0_i32 : i32, i32
  }
  func.func @transform_2(%arg0: i32) -> (i32, i32) {
    %c0_i32 = arith.constant 0 : i32
    %c0_i32_0 = arith.constant 0 : i32
    return %arg0, %c0_i32 : i32, i32
  }
  func.func @transform_3(%arg0: i32) -> (i32, i32) {
    %c0_i32 = arith.constant 0 : i32
    %c0_i32_0 = arith.constant 0 : i32
    %c0_i32_1 = arith.constant 0 : i32
    return %c0_i32, %c0_i32_0 : i32, i32
  }
  func.func @transform_4(%arg0: i32) -> (i32, i32) {
    %c0_i32 = arith.constant 0 : i32
    %c0_i32_0 = arith.constant 0 : i32
    %c0_i32_1 = arith.constant 0 : i32
    return %c0_i32, %c0_i32_0 : i32, i32
  }
  func.func @transform_5(%arg0: i32) -> (i32, i32) {
    %c0_i32 = arith.constant 0 : i32
    %c0_i32_0 = arith.constant 0 : i32
    return %arg0, %c0_i32 : i32, i32
  }
}

</mosaic_0001>

<llo_original>
// kernel: tpu_custom_call.1
$region0: #{tpu_custom_call.1}
  #allocation0 [shape = 'u32[]', space=smem, size = 0x4, offset = 0x4, fixed_abs, tag = 'smem constant byte address 0x4 - core index']
  #allocation1 [shape = 'u32[144,128]{1,0:T(1,128)}', space=vmem, size = 0x12000, scoped, tag = 'internal scratch']
  #allocation2 [shape = 'f32[1]{0:T(128)S(6)}', space=smem, size = 0x200, scoped, tag = 'scoped memory for tpu_custom_call.1']
  %s0 = inlined_call_operand.<no memory space> [shape: f32[1], index: 0, kind: input, shape index: {}]
  %s1 = inlined_call_operand.hbm [shape: f32[4,128], index: 1, kind: input, shape index: {}]
  %s2 = inlined_call_operand.hbm [shape: f32[4,4], index: 2, kind: input, shape index: {}]
  %s3 = inlined_call_operand.vmem [shape: f32[4,128], index: 3, kind: input, shape index: {}]
  %s4 = inlined_call_operand.vmem [shape: f32[1,128], index: 4, kind: input, shape index: {}]
  %s5 = inlined_call_operand.hbm [shape: f32[4,128], index: 5, kind: output, shape index: {}]
  %s6 = sld [smem:[#allocation0]]
  $region38: #{tpu_custom_call.1} parent=0
    _
  %s8 = ssub.s32 1, %s6
  %s9 = scalar_select 0, %s8, %s6
  %10 = sst [smem:[#allocation2]] %s0
  $region1: #{tpu_custom_call.1} parent=0
    #allocation3 [shape = 'u8[2048]{0}', space=vmem, size = 0x800, scoped, tag = 'input window, operand 1, single buffered']
    #allocation4 [shape = 's32[1]{0}', space=sflag, size = 0x4, scoped, tag = 'scoped memory for tpu_custom_call.1']
    #allocation5 [shape = 's32[1]{0}', space=sflag, size = 0x4, scoped, tag = 'scoped memory for tpu_custom_call.1']
    #allocation6 [shape = 'u8[2048]{0}', space=vmem, size = 0x800, scoped, tag = 'input window, operand 2, single buffered']
    #allocation7 [shape = 's32[1]{0}', space=sflag, size = 0x4, scoped, tag = 'scoped memory for tpu_custom_call.1']
    #allocation8 [shape = 'u8[2048]{0}', space=vmem, size = 0x800, scoped, tag = 'output window, operand 0, single buffered']
    %11 = vsyncpa [#allocation4], 0
    %12 = vsyncpa [#allocation7], 0
    %13 = vsyncpa [#allocation5], 0
    // Predicated region
    $region2: #{tpu_custom_call.1} parent=1 // pred_check
      _
    $region3: #{tpu_custom_call.1} parent=1 // pred_check_branch
      %15 = sbr.rel (0) target = $region5
    $region4: #{tpu_custom_call.1} parent=1 // pred_region
      _
    $region5: #{tpu_custom_call.1} parent=1 // pred_fallthru
      _
    // Predicated region
    $region6: #{tpu_custom_call.1} parent=1 // pred_check
      _
    $region7: #{tpu_custom_call.1} parent=1 // pred_check_branch
      %17 = sbr.rel (0) target = $region9
    $region8: #{tpu_custom_call.1} parent=1 // pred_region
      %s19 = ssub.s32 64, 64
      %20 = vsyncadd [#allocation4], %s19
      %s21 = smul.addr %s9, 64
      %s22 = scalar_lea.hbm %s1, %s21
      %s24 = sshll.u32 [#allocation3], 4
      %s25 = int_to_ptr.vmem [resolvable:$true] %s24
      %27 = dma.hbm_to_vmem [thread:$0]  %s22, 64, %s25, [#allocation4]
    $region9: #{tpu_custom_call.1} parent=1 // pred_fallthru
      _
    // Predicated region
    $region10: #{tpu_custom_call.1} parent=1 // pred_check
      _
    $region11: #{tpu_custom_call.1} parent=1 // pred_check_branch
      %29 = sbr.rel (0) target = $region13
    $region12: #{tpu_custom_call.1} parent=1 // pred_region
      %s31 = ssub.s32 64, 64
      %32 = vsyncadd [#allocation7], %s31
      %s33 = smul.addr %s9, 64
      %s34 = scalar_lea.hbm %s2, %s33
      %s36 = sshll.u32 [#allocation6], 4
      %s37 = int_to_ptr.vmem [resolvable:$true] %s36
      %39 = dma.hbm_to_vmem [thread:$0]  %s34, 64, %s37, [#allocation7]
    $region13: #{tpu_custom_call.1} parent=1 // pred_fallthru
      _
    // Predicated region
    $region14: #{tpu_custom_call.1} parent=1 // pred_check
      _
    $region15: #{tpu_custom_call.1} parent=1 // pred_check_branch
      %41 = sbr.rel (0) target = $region17
    $region16: #{tpu_custom_call.1} parent=1 // pred_region
      _
    $region17: #{tpu_custom_call.1} parent=1 // pred_fallthru
      _
    // Predicated region
    $region18: #{tpu_custom_call.1} parent=1 // pred_check
      _
    $region19: #{tpu_custom_call.1} parent=1 // pred_check_branch
      %43 = sbr.rel (0) target = $region21
    $region20: #{tpu_custom_call.1} parent=1 // pred_region
      _
    $region21: #{tpu_custom_call.1} parent=1 // pred_fallthru
      _
    // Predicated region
    $region22: #{tpu_custom_call.1} parent=1 // pred_check
      _
    $region23: #{tpu_custom_call.1} parent=1 // pred_check_branch
      %45 = sbr.rel (0) target = $region25
    $region24: #{tpu_custom_call.1} parent=1 // pred_region
      %46 = dma.done [#allocation4], 64
    $region25: #{tpu_custom_call.1} parent=1 // pred_fallthru
      _
    // Predicated region
    $region26: #{tpu_custom_call.1} parent=1 // pred_check
      _
    $region27: #{tpu_custom_call.1} parent=1 // pred_check_branch
      %48 = sbr.rel (0) target = $region29
    $region28: #{tpu_custom_call.1} parent=1 // pred_region
      %49 = dma.done [#allocation7], 64
    $region29: #{tpu_custom_call.1} parent=1 // pred_fallthru
      _
    %v50 = vld [vmem:[#allocation6] sm:$0xf]
    %v51 = vld [vmem:[%s3] sm:$0x1]
    %53 = vset.pattern.permute.xlu0 0
    %54 = vperm.xlu0 %53, %v50
    %v55 = vpop.permute.xlu0 %54
    %v57 = vlaneseq
    %v58 = vshrl.u32 %v57, 7
    %v59 = vsub.s32 0, %v58
    %v60 = vrot.slane %v51, %v59
    %v61 = vmul.f32 %v55, %v60
    %v62 = vld [vmem:[%s3 + $0x1] sm:$0x1]
    %63 = vset.pattern.permute.xlu0 1
    %64 = vperm.xlu0 %63, %v50
    %v65 = vpop.permute.xlu0 %64
    %v67 = vlaneseq
    %v68 = vshrl.u32 %v67, 7
    %v69 = vsub.s32 0, %v68
    %v70 = vrot.slane %v62, %v69
    %v71 = vmul.f32 %v65, %v70
    %v72 = vadd.f32 %v61, %v71
    %v73 = vld [vmem:[%s3 + $0x2] sm:$0x1]
    %74 = vset.pattern.permute.xlu0 2
    %75 = vperm.xlu0 %74, %v50
    %v76 = vpop.permute.xlu0 %75
    %v78 = vlaneseq
    %v79 = vshrl.u32 %v78, 7
    %v80 = vsub.s32 0, %v79
    %v81 = vrot.slane %v73, %v80
    %v82 = vmul.f32 %v76, %v81
    %v83 = vadd.f32 %v72, %v82
    %v84 = vld [vmem:[%s3 + $0x3] sm:$0x1]
    %85 = vset.pattern.permute.xlu0 3
    %86 = vperm.xlu0 %85, %v50
    %v87 = vpop.permute.xlu0 %86
    %v89 = vlaneseq
    %v90 = vshrl.u32 %v89, 7
    %v91 = vsub.s32 0, %v90
    %v92 = vrot.slane %v84, %v91
    %v93 = vmul.f32 %v87, %v92
    %v94 = vadd.f32 %v83, %v93
    %v95 = vld [vmem:[%s4] sm:$0x1]
    %v97 = vlaneseq
    %v98 = vshrl.u32 %v97, 7
    %v99 = vsub.s32 0, %v98
    %v100 = vrot.slane %v95, %v99
    %v102 = vadd.f32 %v94, %v100
    %v103 = vand.u32 2147483647, %v102
    %vm104 = vcmp.le.f32.partialorder %v103, 0.7853982
    %vm105 = vcmp.lt.s32.totalorder %v102, 0
    %v106 = vand.u32 %v102, 2139095040
    %v107 = vshrl.u32 %v106, 23
    %v108 = vsub.s32 %v107, 127
    %v109 = vand.u32 2147483647, %v102
    %v110 = vand.u32 %v109, 8388607
    %v111 = vor.u32 %v110, 8388608
    %v112 = vsub.s32 0, %v111
    %v113 = vadd.s32 %v108, 1
    %vm114 = vcmp.gt.s32.totalorder %v113, 0
    %v115 = vsel %vm114, %v113, 0
    %v116 = vshrl.u32 %v115, 5
    %v117 = vand.u32 %v115, 31
    %v118 = vsub.s32 32, %v117
    %v119 = vshrl.u32 683565275, %v118
    %v120 = vshll.u32 683565275, %v117
    %v121 = vshrl.u32 2475754826, %v118
    %v122 = vor.u32 %v120, %v121
    %v123 = vshll.u32 2475754826, %v117
    %v124 = vshrl.u32 2131351028, %v118
    %v125 = vor.u32 %v123, %v124
    %v126 = vshll.u32 2131351028, %v117
    %v127 = vshrl.u32 2102212464, %v118
    %v128 = vor.u32 %v126, %v127
    %v129 = vshll.u32 2102212464, %v117
    %v130 = vshrl.u32 920167782, %v118
    %v131 = vor.u32 %v129, %v130
    %v132 = vshll.u32 920167782, %v117
    %v133 = vshrl.u32 1326507024, %v118
    %v134 = vor.u32 %v132, %v133
    %vm135 = vcmp.lt.s32.totalorder %v116, 1
    %vm136 = vcmp.lt.s32.totalorder %v116, 2
    %vm137 = vcmp.lt.s32.totalorder %v116, 3
    %vm138 = vcmp.lt.s32.totalorder %v116, 4
    %v139 = vsel %vm135, %v119, %v122
    %v140 = vsel %vm138, %v128, 2102212464
    %v141 = vsel %vm137, %v125, %v140
    %v142 = vsel %vm136, %v139, %v141
    %v143 = vsel %vm135, %v122, %v125
    %v144 = vsel %vm138, %v131, 920167782
    %v145 = vsel %vm137, %v128, %v144
    %v146 = vsel %vm136, %v143, %v145
    %v147 = vsel %vm135, %v125, %v128
    %v148 = vsel %vm138, %v134, 1326507024
    %v149 = vsel %vm137, %v131, %v148
    %v150 = vsel %vm136, %v147, %v149
    %v151 = vshll.u32 %v111, 8
    %v152 = vmul.u32.u64.compose %v151, %v150
    %v153 = vextract.low.u32 %v152
    %v154 = vextract.high.u32 %v152
    %v155 = vmul.u32.u64.compose %v151, %v146
    %v156 = vextract.low.u32 %v155
    %v157 = vextract.high.u32 %v155
    %v158 = vmul.u32 %v151, %v142
    %v159 = vadd.s32 %v154, %v156
    %vm160 = vc.u32 %v154, %v156
    %v161 = vadd.s32 %v157, 1
    %v162 = vsel %vm160, %v161, %v157
    %v163 = vadd.s32 %v158, %v162
    %v164 = vadd.s32 %v163, 536870912
    %v165 = vshrl.u32 %v164, 30
    %v166 = vshll.u32 %v165, 30
    %v167 = vsub.s32 %v163, %v166
    %vm168 = vcmp.lt.s32.totalorder %v167, 0
    %v169 = vsub.s32 0, %v167
    %v170 = vsel %vm168, %v169, %v167
    %v171 = vclz %v170
    %v172 = vsub.s32 %v171, 2
    %vm173 = vcmp.gt.s32.totalorder 0, %v172
    %v174 = vsel %vm173, 0, %v172
    %v175 = vsub.s32 32, %v174
    %v176 = vshll.u32 %v167, %v174
    %v177 = vshrl.u32 %v159, %v175
    %v178 = vor.u32 %v176, %v177
    %v179 = vsub.s32 4294967266, %v174
    %v180 = vadd.s32 %v179, 127
    %v181 = vshll.u32 %v180, 23
    %v182 = vor.u32 4788187, %v181
    %v183 = vand.u32 2147483647, %v182
    %v185 = vcvt.s32.f32 %v178
    %v186 = vmul.f32 %v185, %v183
    %v187 = vxor.u32 %v186, 2147483648
    %v188 = vsel %vm105, %v187, %v186
    %v189 = vsub.s32 4, %v165
    %v190 = vsel %vm105, %v189, %v165
    %v191 = vsel %vm104, %v102, %v188
    %v192 = vsel %vm104, 0, %v190
    %v193 = vcosq.f32.pop %v191
    %v194 = vsinq.f32.pop %v191
    %vm195 = vweird.f32 %v102
    %v196 = vadd.s32 %v192, 3
    %v197 = vand.u32 %v196, 3
    %vm198 = vcmp.lt.s32.totalorder %v197, 2
    %vm199 = vcmp.eq.s32.totalorder %v197, 0
    %v200 = vxor.u32 %v194, 2147483648
    %v201 = vsel %vm199, %v193, %v200
    %vm202 = vcmp.eq.s32.totalorder %v197, 2
    %v203 = vxor.u32 %v193, 2147483648
    %v204 = vsel %vm202, %v203, %v194
    %v205 = vsel %vm198, %v201, %v204
    %v206 = vsel %vm195, nan, %v205
    %v207 = vld [vmem:[#allocation3] sm:$0xf]
    %s208 = sld [smem:[#allocation2]]
    %v209 = vstv %s208
    %v210 = vmul.f32 %v209, %v206
    %v211 = vadd.f32 %v207, %v210
    %212 = vst [vmem:[#allocation8] sm:$0xf] %v211
    // Predicated region
    $region30: #{tpu_custom_call.1} parent=1 // pred_check
      _
    $region31: #{tpu_custom_call.1} parent=1 // pred_check_branch
      %214 = sbr.rel (0) target = $region33
    $region32: #{tpu_custom_call.1} parent=1 // pred_region
      %s216 = ssub.s32 64, 64
      %217 = vsyncadd [#allocation5], %s216
      %s218 = smul.addr %s9, 64
      %s219 = scalar_lea.hbm %s5, %s218
      %s221 = sshll.u32 [#allocation8], 4
      %s222 = int_to_ptr.vmem [resolvable:$true] %s221
      %224 = dma.vmem_to_hbm [thread:$0]  %s222, 64, %s219, [#allocation5]
    $region33: #{tpu_custom_call.1} parent=1 // pred_fallthru
      _
    // Predicated region
    $region34: #{tpu_custom_call.1} parent=1 // pred_check
      _
    $region35: #{tpu_custom_call.1} parent=1 // pred_check_branch
      %226 = sbr.rel (0) target = $region37
    $region36: #{tpu_custom_call.1} parent=1 // pred_region
      %227 = dma.done [#allocation5], 64
    $region37: #{tpu_custom_call.1} parent=1 // pred_fallthru
      _
    %228 = vsyncpa [#allocation4], 1
    %229 = vsyncpa [#allocation7], 1
    %230 = vsyncpa [#allocation5], 1

// kernel: tpu_custom_call.1
$region0: #{tpu_custom_call.1}
  #allocation0 [shape = 'u32[]', space=smem, size = 0x4, offset = 0x4, fixed_abs, tag = 'smem constant byte address 0x4 - core index']
  #allocation1 [shape = 'u32[144,128]{1,0:T(1,128)}', space=vmem, size = 0x12000, scoped, tag = 'internal scratch']
  #allocation2 [shape = 'f32[1]{0:T(128)S(6)}', space=smem, size = 0x200, scoped, tag = 'scoped memory for tpu_custom_call.1']
  %s0 = inlined_call_operand.<no memory space> [shape: f32[1], index: 0, kind: input, shape index: {}]
  %s1 = inlined_call_operand.hbm [shape: f32[4,128], index: 1, kind: input, shape index: {}]
  %s2 = inlined_call_operand.hbm [shape: f32[4,4], index: 2, kind: input, shape index: {}]
  %s3 = inlined_call_operand.vmem [shape: f32[4,128], index: 3, kind: input, shape index: {}]
  %s4 = inlined_call_operand.vmem [shape: f32[1,128], index: 4, kind: input, shape index: {}]
  %s5 = inlined_call_operand.hbm [shape: f32[4,128], index: 5, kind: output, shape index: {}]
  %s6 = sld [smem:[#allocation0]]
  $region38: #{tpu_custom_call.1} parent=0
    _
  %s8 = ssub.s32 1, %s6
  %s9 = scalar_select 0, %s8, %s6
  %10 = sst [smem:[#allocation2]] %s0
  $region1: #{tpu_custom_call.1} parent=0
    #allocation3 [shape = 'u8[2048]{0}', space=vmem, size = 0x800, scoped, tag = 'input window, operand 1, single buffered']
    #allocation4 [shape = 's32[1]{0}', space=sflag, size = 0x4, scoped, tag = 'scoped memory for tpu_custom_call.1']
    #allocation5 [shape = 's32[1]{0}', space=sflag, size = 0x4, scoped, tag = 'scoped memory for tpu_custom_call.1']
    #allocation6 [shape = 'u8[2048]{0}', space=vmem, size = 0x800, scoped, tag = 'input window, operand 2, single buffered']
    #allocation7 [shape = 's32[1]{0}', space=sflag, size = 0x4, scoped, tag = 'scoped memory for tpu_custom_call.1']
    #allocation8 [shape = 'u8[2048]{0}', space=vmem, size = 0x800, scoped, tag = 'output window, operand 0, single buffered']
    %11 = vsyncpa [#allocation4], 0
    %12 = vsyncpa [#allocation7], 0
    %13 = vsyncpa [#allocation5], 0
    // Predicated region
    $region2: #{tpu_custom_call.1} parent=1 // pred_check
      _
    $region3: #{tpu_custom_call.1} parent=1 // pred_check_branch
      %15 = sbr.rel (0) target = $region5
    $region4: #{tpu_custom_call.1} parent=1 // pred_region
      _
    $region5: #{tpu_custom_call.1} parent=1 // pred_fallthru
      _
    // Predicated region
    $region6: #{tpu_custom_call.1} parent=1 // pred_check
      _
    $region7: #{tpu_custom_call.1} parent=1 // pred_check_branch
      %17 = sbr.rel (0) target = $region9
    $region8: #{tpu_custom_call.1} parent=1 // pred_region
      %s19 = ssub.s32 64, 64
      %20 = vsyncadd [#allocation4], %s19
      %s22 = sshll.u32 [#allocation3], 4
      %s23 = int_to_ptr.vmem [resolvable:$true] %s22
      %25 = dma.hbm_to_vmem [thread:$0]  %s1, 64, %s23, [#allocation4]
    $region9: #{tpu_custom_call.1} parent=1 // pred_fallthru
      _
    // Predicated region
    $region10: #{tpu_custom_call.1} parent=1 // pred_check
      _
    $region11: #{tpu_custom_call.1} parent=1 // pred_check_branch
      %27 = sbr.rel (0) target = $region13
    $region12: #{tpu_custom_call.1} parent=1 // pred_region
      %s29 = ssub.s32 64, 64
      %30 = vsyncadd [#allocation7], %s29
      %s32 = sshll.u32 [#allocation6], 4
      %s33 = int_to_ptr.vmem [resolvable:$true] %s32
      %35 = dma.hbm_to_vmem [thread:$0]  %s2, 64, %s33, [#allocation7]
    $region13: #{tpu_custom_call.1} parent=1 // pred_fallthru
      _
    // Predicated region
    $region14: #{tpu_custom_call.1} parent=1 // pred_check
      _
    $region15: #{tpu_custom_call.1} parent=1 // pred_check_branch
      %37 = sbr.rel (0) target = $region17
    $region16: #{tpu_custom_call.1} parent=1 // pred_region
      _
    $region17: #{tpu_custom_call.1} parent=1 // pred_fallthru
      _
    // Predicated region
    $region18: #{tpu_custom_call.1} parent=1 // pred_check
      _
    $region19: #{tpu_custom_call.1} parent=1 // pred_check_branch
      %39 = sbr.rel (0) target = $region21
    $region20: #{tpu_custom_call.1} parent=1 // pred_region
      _
    $region21: #{tpu_custom_call.1} parent=1 // pred_fallthru
      _
    // Predicated region
    $region22: #{tpu_custom_call.1} parent=1 // pred_check
      _
    $region23: #{tpu_custom_call.1} parent=1 // pred_check_branch
      %41 = sbr.rel (0) target = $region25
    $region24: #{tpu_custom_call.1} parent=1 // pred_region
      %42 = dma.done [#allocation4], 64
    $region25: #{tpu_custom_call.1} parent=1 // pred_fallthru
      _
    // Predicated region
    $region26: #{tpu_custom_call.1} parent=1 // pred_check
      _
    $region27: #{tpu_custom_call.1} parent=1 // pred_check_branch
      %44 = sbr.rel (0) target = $region29
    $region28: #{tpu_custom_call.1} parent=1 // pred_region
      %45 = dma.done [#allocation7], 64
    $region29: #{tpu_custom_call.1} parent=1 // pred_fallthru
      _
    %v46 = vld [vmem:[#allocation6] sm:$0xf]
    %v47 = vld [vmem:[%s3] sm:$0x1]
    %49 = vset.pattern.permute.xlu0 0
    %50 = vperm.xlu0 %49, %v46
    %v51 = vpop.permute.xlu0 %50
    %v53 = vlaneseq
    %v54 = vshrl.u32 %v53, 7
    %v55 = vsub.s32 0, %v54
    %v56 = vrot.slane %v47, %v55
    %v57 = vmul.f32 %v51, %v56
    %v58 = vld [vmem:[%s3 + $0x1] sm:$0x1]
    %59 = vset.pattern.permute.xlu0 1
    %60 = vperm.xlu0 %59, %v46
    %v61 = vpop.permute.xlu0 %60
    %v63 = vlaneseq
    %v64 = vshrl.u32 %v63, 7
    %v65 = vsub.s32 0, %v64
    %v66 = vrot.slane %v58, %v65
    %v67 = vmul.f32 %v61, %v66
    %v68 = vadd.f32 %v57, %v67
    %v69 = vld [vmem:[%s3 + $0x2] sm:$0x1]
    %70 = vset.pattern.permute.xlu0 2
    %71 = vperm.xlu0 %70, %v46
    %v72 = vpop.permute.xlu0 %71
    %v74 = vlaneseq
    %v75 = vshrl.u32 %v74, 7
    %v76 = vsub.s32 0, %v75
    %v77 = vrot.slane %v69, %v76
    %v78 = vmul.f32 %v72, %v77
    %v79 = vadd.f32 %v68, %v78
    %v80 = vld [vmem:[%s3 + $0x3] sm:$0x1]
    %81 = vset.pattern.permute.xlu0 3
    %82 = vperm.xlu0 %81, %v46
    %v83 = vpop.permute.xlu0 %82
    %v85 = vlaneseq
    %v86 = vshrl.u32 %v85, 7
    %v87 = vsub.s32 0, %v86
    %v88 = vrot.slane %v80, %v87
    %v89 = vmul.f32 %v83, %v88
    %v90 = vadd.f32 %v79, %v89
    %v91 = vld [vmem:[%s4] sm:$0x1]
    %v93 = vlaneseq
    %v94 = vshrl.u32 %v93, 7
    %v95 = vsub.s32 0, %v94
    %v96 = vrot.slane %v91, %v95
    %v98 = vadd.f32 %v90, %v96
    %v99 = vand.u32 2147483647, %v98
    %vm100 = vcmp.le.f32.partialorder %v99, 0.7853982
    %vm101 = vcmp.lt.s32.totalorder %v98, 0
    %v102 = vand.u32 %v98, 2139095040
    %v103 = vshrl.u32 %v102, 23
    %v104 = vsub.s32 %v103, 127
    %v105 = vand.u32 2147483647, %v98
    %v106 = vand.u32 %v105, 8388607
    %v107 = vor.u32 %v106, 8388608
    %v108 = vsub.s32 0, %v107
    %v109 = vadd.s32 %v104, 1
    %vm110 = vcmp.gt.s32.totalorder %v109, 0
    %v111 = vsel %vm110, %v109, 0
    %v112 = vshrl.u32 %v111, 5
    %v113 = vand.u32 %v111, 31
    %v114 = vsub.s32 32, %v113
    %v115 = vshrl.u32 683565275, %v114
    %v116 = vshll.u32 683565275, %v113
    %v117 = vshrl.u32 2475754826, %v114
    %v118 = vor.u32 %v116, %v117
    %v119 = vshll.u32 2475754826, %v113
    %v120 = vshrl.u32 2131351028, %v114
    %v121 = vor.u32 %v119, %v120
    %v122 = vshll.u32 2131351028, %v113
    %v123 = vshrl.u32 2102212464, %v114
    %v124 = vor.u32 %v122, %v123
    %v125 = vshll.u32 2102212464, %v113
    %v126 = vshrl.u32 920167782, %v114
    %v127 = vor.u32 %v125, %v126
    %v128 = vshll.u32 920167782, %v113
    %v129 = vshrl.u32 1326507024, %v114
    %v130 = vor.u32 %v128, %v129
    %vm131 = vcmp.lt.s32.totalorder %v112, 1
    %vm132 = vcmp.lt.s32.totalorder %v112, 2
    %vm133 = vcmp.lt.s32.totalorder %v112, 3
    %vm134 = vcmp.lt.s32.totalorder %v112, 4
    %v135 = vsel %vm131, %v115, %v118
    %v136 = vsel %vm134, %v124, 2102212464
    %v137 = vsel %vm133, %v121, %v136
    %v138 = vsel %vm132, %v135, %v137
    %v139 = vsel %vm131, %v118, %v121
    %v140 = vsel %vm134, %v127, 920167782
    %v141 = vsel %vm133, %v124, %v140
    %v142 = vsel %vm132, %v139, %v141
    %v143 = vsel %vm131, %v121, %v124
    %v144 = vsel %vm134, %v130, 1326507024
    %v145 = vsel %vm133, %v127, %v144
    %v146 = vsel %vm132, %v143, %v145
    %v147 = vshll.u32 %v107, 8
    %v148 = vmul.u32.u64.compose %v147, %v146
    %v149 = vextract.low.u32 %v148
    %v150 = vextract.high.u32 %v148
    %v151 = vmul.u32.u64.compose %v147, %v142
    %v152 = vextract.low.u32 %v151
    %v153 = vextract.high.u32 %v151
    %v154 = vmul.u32 %v147, %v138
    %v155 = vadd.s32 %v150, %v152
    %vm156 = vc.u32 %v150, %v152
    %v157 = vadd.s32 %v153, 1
    %v158 = vsel %vm156, %v157, %v153
    %v159 = vadd.s32 %v154, %v158
    %v160 = vadd.s32 %v159, 536870912
    %v161 = vshrl.u32 %v160, 30
    %v162 = vshll.u32 %v161, 30
    %v163 = vsub.s32 %v159, %v162
    %vm164 = vcmp.lt.s32.totalorder %v163, 0
    %v165 = vsub.s32 0, %v163
    %v166 = vsel %vm164, %v165, %v163
    %v167 = vclz %v166
    %v168 = vsub.s32 %v167, 2
    %vm169 = vcmp.gt.s32.totalorder 0, %v168
    %v170 = vsel %vm169, 0, %v168
    %v171 = vsub.s32 32, %v170
    %v172 = vshll.u32 %v163, %v170
    %v173 = vshrl.u32 %v155, %v171
    %v174 = vor.u32 %v172, %v173
    %v175 = vsub.s32 4294967266, %v170
    %v176 = vadd.s32 %v175, 127
    %v177 = vshll.u32 %v176, 23
    %v178 = vor.u32 4788187, %v177
    %v179 = vand.u32 2147483647, %v178
    %v181 = vcvt.s32.f32 %v174
    %v182 = vmul.f32 %v181, %v179
    %v183 = vxor.u32 %v182, 2147483648
    %v184 = vsel %vm101, %v183, %v182
    %v185 = vsub.s32 4, %v161
    %v186 = vsel %vm101, %v185, %v161
    %v187 = vsel %vm100, %v98, %v184
    %v188 = vsel %vm100, 0, %v186
    %v189 = vcosq.f32.pop %v187
    %v190 = vsinq.f32.pop %v187
    %vm191 = vweird.f32 %v98
    %v192 = vadd.s32 %v188, 3
    %v193 = vand.u32 %v192, 3
    %vm194 = vcmp.lt.s32.totalorder %v193, 2
    %vm195 = vcmp.eq.s32.totalorder %v193, 0
    %v196 = vxor.u32 %v190, 2147483648
    %v197 = vsel %vm195, %v189, %v196
    %vm198 = vcmp.eq.s32.totalorder %v193, 2
    %v199 = vxor.u32 %v189, 2147483648
    %v200 = vsel %vm198, %v199, %v190
    %v201 = vsel %vm194, %v197, %v200
    %v202 = vsel %vm191, nan, %v201
    %v203 = vld [vmem:[#allocation3] sm:$0xf]
    %s204 = sld [smem:[#allocation2]]
    %v205 = vstv %s204
    %v206 = vmul.f32 %v205, %v202
    %v207 = vadd.f32 %v203, %v206
    %208 = vst [vmem:[#allocation8] sm:$0xf] %v207
    // Predicated region
    $region30: #{tpu_custom_call.1} parent=1 // pred_check
      _
    $region31: #{tpu_custom_call.1} parent=1 // pred_check_branch
      %210 = sbr.rel (0) target = $region33
    $region32: #{tpu_custom_call.1} parent=1 // pred_region
      %s212 = ssub.s32 64, 64
      %213 = vsyncadd [#allocation5], %s212
      %s215 = sshll.u32 [#allocation8], 4
      %s216 = int_to_ptr.vmem [resolvable:$true] %s215
      %218 = dma.vmem_to_hbm [thread:$0]  %s216, 64, %s5, [#allocation5]
    $region33: #{tpu_custom_call.1} parent=1 // pred_fallthru
      _
    // Predicated region
    $region34: #{tpu_custom_call.1} parent=1 // pred_check
      _
    $region35: #{tpu_custom_call.1} parent=1 // pred_check_branch
      %220 = sbr.rel (0) target = $region37
    $region36: #{tpu_custom_call.1} parent=1 // pred_region
      %221 = dma.done [#allocation5], 64
    $region37: #{tpu_custom_call.1} parent=1 // pred_fallthru
      _
    %222 = vsyncpa [#allocation4], 1
    %223 = vsyncpa [#allocation7], 1
    %224 = vsyncpa [#allocation5], 1

</llo_original>
